<compile_context>
chip_gen: v7x
topology: tpu7x:2x2x1
jax: 0.10.0
libtpu: 0.0.40
codegen_flags: <defaults>
</compile_context>

<pallas_src>
import math

import jax
import jax.numpy as jnp
from jax.experimental import pallas as pl
from jax.experimental.pallas import tpu as pltpu

_LANE = 128      # TPU vreg lane width
_SUBLANE = 8     # TPU vreg sublanes (f32)

_VMEM = pl.BlockSpec(memory_space=pltpu.MemorySpace.VMEM)
_SMEM = pl.BlockSpec(memory_space=pltpu.MemorySpace.SMEM)


def _round_up(n, m):
    return ((n + m - 1) // m) * m


# ----------------------------------------------------------------------------
# glue: distance matrix (same math as compute_distance_matrix in the module)
# ----------------------------------------------------------------------------
def compute_distance_matrix(N, M, A, B, D):
    x_in = jnp.linspace(-A / 2.0, A / 2.0, N)          # (N,)
    y_in = jnp.full((N,), -D / 2.0)
    x_out = jnp.linspace(-B / 2.0, B / 2.0, M)         # (M,)
    y_out = jnp.full((M,), D / 2.0)
    dx = x_out[None, :] - x_in[:, None]                # (N, M)
    dy = y_out[None, :] - y_in[:, None]
    dist = jnp.sqrt(dx * dx + dy * dy)                 # (N, M)
    return dist.T                                      # (M, N) == weight shape


def _pad2d(x, rows, cols):
    """Zero-pad a 2D array up to (rows, cols)."""
    pr = rows - x.shape[0]
    pc = cols - x.shape[1]
    if pr <= 0 and pc <= 0:
        return x
    return jnp.pad(x, ((0, max(pr, 0)), (0, max(pc, 0))))


# ----------------------------------------------------------------------------
# Pallas kernels
# ----------------------------------------------------------------------------
def _mlp_kernel(x_ref, w1t_ref, b1_ref, w2t_ref, b2_ref, y_ref):
    # x: (Bpad, In), w1t: (In, Hpad), b1: (1, Hpad), w2t: (Hpad, OutPad),
    # b2: (1, OutPad).  All lane/sublane dense -> unmasked vld/vst.
    h = jnp.dot(x_ref[...], w1t_ref[...],
                preferred_element_type=jnp.float32) + b1_ref[...]
    h = jnp.maximum(h, 0.0)                                     # ReLU
    y = jnp.dot(h, w2t_ref[...],
                preferred_element_type=jnp.float32) + b2_ref[...]
    y_ref[...] = y.astype(y_ref.dtype)


def _cost_kernel(w1_ref, d1_ref, w2_ref, d2_ref, cost_ref):
    # distance matrices are pre-scaled by spatial_cost_scale / total_params.
    p1 = jnp.abs(w1_ref[...]) * d1_ref[...]   # VPU products first,
    p2 = jnp.abs(w2_ref[...]) * d2_ref[...]   # XLU reduces after.
    cost_ref[0] = jnp.sum(p1) + jnp.sum(p2)   # scalar via SMEM


def _fused_kernel(x_ref, w1t_ref, b1_ref, w2t_ref, b2_ref,
                  w1_ref, d1_ref, w2_ref, d2_ref,
                  y_ref, cost_ref):
    # Spatial-cost VPU/XLU work hides under the forward matmul slots.
    p1 = jnp.abs(w1_ref[...]) * d1_ref[...]
    p2 = jnp.abs(w2_ref[...]) * d2_ref[...]
    h = jnp.dot(x_ref[...], w1t_ref[...],
                preferred_element_type=jnp.float32) + b1_ref[...]
    h = jnp.maximum(h, 0.0)
    y = jnp.dot(h, w2t_ref[...],
                preferred_element_type=jnp.float32) + b2_ref[...]
    y_ref[...] = y.astype(y_ref.dtype)
    cost_ref[0] = jnp.sum(p1) + jnp.sum(p2)


# ----------------------------------------------------------------------------
# SpatialNet wrapper (parameters + preprocessed tensors held as JAX arrays)
# ----------------------------------------------------------------------------
class SpatialNetPallas:
    def __init__(self, key, in_features, hidden, out_features,
                 A=1.0, B=1.0, D=1.0, spatial_cost_scale=1e-4):
        self.spatial_cost_scale = spatial_cost_scale
        self.in_features = in_features
        self.hidden = hidden
        self.out_features = out_features
        k1, k2, k3, k4 = jax.random.split(key, 4)

        # deterministic PyTorch-Linear-style init: U(-1/sqrt(fan_in), +)
        bnd1 = 1.0 / math.sqrt(in_features)
        bnd2 = 1.0 / math.sqrt(hidden)
        self.w1 = jax.random.uniform(k1, (hidden, in_features),
                                     jnp.float32, -bnd1, bnd1)
        self.b1 = jax.random.uniform(k2, (hidden,), jnp.float32, -bnd1, bnd1)
        self.w2 = jax.random.uniform(k3, (out_features, hidden),
                                     jnp.float32, -bnd2, bnd2)
        self.b2 = jax.random.uniform(k4, (out_features,), jnp.float32, -bnd2, bnd2)

        self.total_params = self.w1.size + self.w2.size

        # ---- hoisted per-call preprocessing (done exactly once) ----
        # Lane-dense padded shapes: hidden and output both padded to 128 lanes.
        # ReLU(0 + 0) = 0 and zero rows of w2t contribute nothing -> exact.
        self.h_pad = _round_up(max(hidden, _LANE), _LANE)
        self.out_pad = _round_up(max(out_features, _LANE), _LANE)
        self.w1t_pad = _pad2d(jnp.asarray(self.w1.T),
                              in_features, self.h_pad)            # (In, Hpad)
        self.b1r_pad = _pad2d(jnp.asarray(self.b1.reshape(1, -1)),
                              1, self.h_pad)                       # (1, Hpad)
        self.w2t_pad = _pad2d(jnp.asarray(self.w2.T),
                              self.h_pad, self.out_pad)            # (Hpad, OutPad)
        self.b2r_pad = _pad2d(jnp.asarray(self.b2.reshape(1, -1)),
                              1, self.out_pad)                     # (1, OutPad)

        # distance matrices (shape == weight shape), with the final scale
        # spatial_cost_scale / total_params folded in once.
        scale = spatial_cost_scale / float(self.total_params)
        self.d1 = compute_distance_matrix(in_features, hidden, A, B, D)
        self.d2 = compute_distance_matrix(hidden, out_features, A, B, D)
        self.d1_scaled = self.d1 * scale
        self.d2_scaled = self.d2 * scale

        # ---- jitted wrappers (padding + pallas_call + slice fuse here) ----
        self._forward_jit = self._build_forward()
        self._cost_jit = self._build_cost()
        self._fwd_cost_jit = self._build_fused()

    # -- builders -------------------------------------------------------------
    def _build_forward(self):
        out_features = self.out_features
        out_pad = self.out_pad

        @jax.jit
        def fwd(x, w1t, b1r, w2t, b2r):
            b = x.shape[0]
            b_pad = _round_up(b, _SUBLANE)
            if b_pad != b:
                x = jnp.pad(x, ((0, b_pad - b), (0, 0)))
            y_pad = pl.pallas_call(
                _mlp_kernel,
                out_shape=jax.ShapeDtypeStruct((b_pad, out_pad), x.dtype),
                in_specs=[_VMEM] * 5,
                out_specs=_VMEM,
            )(x, w1t, b1r, w2t, b2r)
            return y_pad[:b, :out_features]

        return fwd

    def _build_cost(self):
        @jax.jit
        def cost(w1, d1, w2, d2):
            total = pl.pallas_call(
                _cost_kernel,
                out_shape=jax.ShapeDtypeStruct((1,), jnp.float32),
                in_specs=[_VMEM] * 4,
                out_specs=_SMEM,
            )(w1, d1, w2, d2)
            return total[0]

        return cost

    def _build_fused(self):
        out_features = self.out_features
        out_pad = self.out_pad

        @jax.jit
        def fwd_cost(x, w1t, b1r, w2t, b2r, w1, d1, w2, d2):
            b = x.shape[0]
            b_pad = _round_up(b, _SUBLANE)
            if b_pad != b:
                x = jnp.pad(x, ((0, b_pad - b), (0, 0)))
            y_pad, total = pl.pallas_call(
                _fused_kernel,
                out_shape=(
                    jax.ShapeDtypeStruct((b_pad, out_pad), x.dtype),
                    jax.ShapeDtypeStruct((1,), jnp.float32),
                ),
                in_specs=[_VMEM] * 9,
                out_specs=(_VMEM, _SMEM),
            )(x, w1t, b1r, w2t, b2r, w1, d1, w2, d2)
            return y_pad[:b, :out_features], total[0]

        return fwd_cost

    # -- public API (mirrors SpatialNet) --------------------------------------
    def forward(self, x):
        # SpatialNet.forward == self.model(x)  (Linear -> ReLU -> Linear)
        return self._forward_jit(x, self.w1t_pad, self.b1r_pad,
                                 self.w2t_pad, self.b2r_pad)

    def get_cost(self):
        # scale is already folded into the distance matrices
        return self._cost_jit(self.w1, self.d1_scaled, self.w2, self.d2_scaled)

    def forward_and_cost(self, x):
        # fused training-step variant: one pallas_call for both outputs
        return self._fwd_cost_jit(x, self.w1t_pad, self.b1r_pad,
                                  self.w2t_pad, self.b2r_pad,
                                  self.w1, self.d1_scaled,
                                  self.w2, self.d2_scaled)


# ----------------------------------------------------------------------------
if __name__ == "__main__":
    key = jax.random.PRNGKey(0)
    k_params, k_x = jax.random.split(key)

    batch, in_features, hidden, out_features = 2, 16, 32, 8
    net = SpatialNetPallas(k_params, in_features, hidden, out_features,
                           A=1.0, B=1.0, D=1.0, spatial_cost_scale=1e-4)

    x = jax.random.normal(k_x, (batch, in_features), jnp.float32)

    # separate calls (inference / standalone regularizer)
    y = jax.block_until_ready(net.forward(x))
    cost = jax.block_until_ready(net.get_cost())
    assert y.shape == (batch, out_features), y.shape

    # fused call (training-step path)
    y_f, cost_f = net.forward_and_cost(x)
    y_f = jax.block_until_ready(y_f)
    cost_f = jax.block_until_ready(cost_f)

    # reference checks (plain JAX) for correctness
    ref_y = jnp.maximum(x @ net.w1.T + net.b1, 0.0) @ net.w2.T + net.b2
    ref_cost = net.spatial_cost_scale * (
        jnp.sum(jnp.abs(net.w1) * net.d1) + jnp.sum(jnp.abs(net.w2) * net.d2)
    ) / net.total_params
    assert jnp.allclose(y, ref_y, atol=1e-5, rtol=1e-5)
    assert jnp.allclose(y_f, ref_y, atol=1e-5, rtol=1e-5)
    assert jnp.allclose(cost, ref_cost, atol=1e-6, rtol=1e-5)
    assert jnp.allclose(cost_f, ref_cost, atol=1e-6, rtol=1e-5)

    print("KERNEL_OK")
</pallas_src>

<mosaic_0001>
module attributes {stable_mosaic.version = 11 : i64} {
  func.func @_mlp_kernel(%arg0: memref<8x16xf32, #tpu.memory_space<vmem>>, %arg1: memref<16x128xf32, #tpu.memory_space<vmem>>, %arg2: memref<1x128xf32, #tpu.memory_space<vmem>>, %arg3: memref<128x128xf32, #tpu.memory_space<vmem>>, %arg4: memref<1x128xf32, #tpu.memory_space<vmem>>, %arg5: memref<8x128xf32, #tpu.memory_space<vmem>>) attributes {dimension_semantics = [], scalar_prefetch = 0 : i64, scratch_operands = 0 : i64, tpu.core_type = #tpu.core_type<tc>} {
    %c0 = arith.constant 0 : index
    %c0_0 = arith.constant 0 : index
    %0 = vector.load %arg0[%c0, %c0_0] : memref<8x16xf32, #tpu.memory_space<vmem>>, vector<8x16xf32>
    %c0_1 = arith.constant 0 : index
    %c0_2 = arith.constant 0 : index
    %1 = vector.load %arg1[%c0_1, %c0_2] : memref<16x128xf32, #tpu.memory_space<vmem>>, vector<16x128xf32>
    %cst = arith.constant dense<0.000000e+00> : vector<8x128xf32>
    %2 = tpu.matmul %0, %1, %cst {dimension_numbers = #tpu.dot_dimension_numbers<[1], [0], [0], [1], [0, 0, 1, 1], [], []>} : vector<8x16xf32>, vector<16x128xf32>, vector<8x128xf32> -> vector<8x128xf32>
    %c0_3 = arith.constant 0 : index
    %c0_4 = arith.constant 0 : index
    %3 = vector.load %arg2[%c0_3, %c0_4] : memref<1x128xf32, #tpu.memory_space<vmem>>, vector<1x128xf32>
    %4 = vector.broadcast %3 : vector<1x128xf32> to vector<8x128xf32>
    %5 = arith.addf %2, %4 : vector<8x128xf32>
    %cst_5 = arith.constant 0.000000e+00 : f32
    %6 = vector.broadcast %cst_5 : f32 to vector<8x128xf32>
    %7 = arith.maximumf %5, %6 : vector<8x128xf32>
    %c0_6 = arith.constant 0 : index
    %c0_7 = arith.constant 0 : index
    %8 = vector.load %arg3[%c0_6, %c0_7] : memref<128x128xf32, #tpu.memory_space<vmem>>, vector<128x128xf32>
    %cst_8 = arith.constant dense<0.000000e+00> : vector<8x128xf32>
    %9 = tpu.matmul %7, %8, %cst_8 {dimension_numbers = #tpu.dot_dimension_numbers<[1], [0], [0], [1], [0, 0, 1, 1], [], []>} : vector<8x128xf32>, vector<128x128xf32>, vector<8x128xf32> -> vector<8x128xf32>
    %c0_9 = arith.constant 0 : index
    %c0_10 = arith.constant 0 : index
    %10 = vector.load %arg4[%c0_9, %c0_10] : memref<1x128xf32, #tpu.memory_space<vmem>>, vector<1x128xf32>
    %11 = vector.broadcast %10 : vector<1x128xf32> to vector<8x128xf32>
    %12 = arith.addf %9, %11 : vector<8x128xf32>
    %c0_11 = arith.constant 0 : index
    %c0_12 = arith.constant 0 : index
    %13 = vector.load %arg5[%c0_11, %c0_12] : memref<8x128xf32, #tpu.memory_space<vmem>>, vector<8x128xf32>
    tpu.vector_store %arg5[%c0_11, %c0_12], %12 {strides = array<i32>} : memref<8x128xf32, #tpu.memory_space<vmem>>, vector<8x128xf32>,
    return
  }
}

</mosaic_0001>

<llo_original>
// kernel: fwd.1
$region0: #{fwd.1}
  #allocation0 [shape = 'u32[]', space=smem, size = 0x4, offset = 0x4, fixed_abs, tag = 'smem constant byte address 0x4 - core index']
  #allocation1 [shape = 'u32[144,128]{1,0:T(1,128)}', space=vmem, size = 0x12000, scoped, tag = 'internal scratch']
  %s0 = inlined_call_operand.vmem [shape: f32[8,16], index: 0, kind: input, shape index: {}]
  %s1 = inlined_call_operand.hbm [shape: f32[16,128], index: 1, kind: input, shape index: {}]
  %s2 = inlined_call_operand.vmem [shape: f32[1,128], index: 2, kind: input, shape index: {}]
  %s3 = inlined_call_operand.hbm [shape: f32[128,128], index: 3, kind: input, shape index: {}]
  %s4 = inlined_call_operand.vmem [shape: f32[1,128], index: 4, kind: input, shape index: {}]
  %s5 = inlined_call_operand.vmem [shape: f32[8,128], index: 5, kind: output, shape index: {}]
  %s6 = sld [smem:[#allocation0]]
  $region38: #{fwd.1} parent=0
    _
  %s8 = ssub.s32 1, %s6
  %s9 = scalar_select 0, %s8, %s6
  $region1: #{fwd.1} parent=0
    #allocation2 [shape = 'u8[8192]{0}', space=vmem, size = 0x2000, scoped, tag = 'input window, operand 1, single buffered']
    #allocation3 [shape = 's32[1]{0}', space=sflag, size = 0x4, scoped, tag = 'scoped memory for fwd.1']
    #allocation4 [shape = 'u8[65536]{0}', space=vmem, size = 0x10000, scoped, tag = 'input window, operand 3, single buffered']
    #allocation5 [shape = 's32[1]{0}', space=sflag, size = 0x4, scoped, tag = 'scoped memory for fwd.1']
    %10 = vsyncpa [#allocation3], 0
    %11 = vsyncpa [#allocation5], 0
    // Predicated region
    $region2: #{fwd.1} parent=1 // pred_check
      _
    $region3: #{fwd.1} parent=1 // pred_check_branch
      %13 = sbr.rel (0) target = $region5
    $region4: #{fwd.1} parent=1 // pred_region
      _
    $region5: #{fwd.1} parent=1 // pred_fallthru
      _
    // Predicated region
    $region6: #{fwd.1} parent=1 // pred_check
      _
    $region7: #{fwd.1} parent=1 // pred_check_branch
      %15 = sbr.rel (0) target = $region9
    $region8: #{fwd.1} parent=1 // pred_region
      %s17 = ssub.s32 256, 256
      %18 = vsyncadd [#allocation3], %s17
      %s19 = sshll.u32 [#allocation2], 4
      %s20 = int_to_ptr.vmem [resolvable:$true] %s19
      %25 = dma.hbm_to_vmem [thread:$0]  %s1, 256, %s20, [#allocation3], 128, 128, 8
    $region9: #{fwd.1} parent=1 // pred_fallthru
      _
    // Predicated region
    $region10: #{fwd.1} parent=1 // pred_check
      _
    $region11: #{fwd.1} parent=1 // pred_check_branch
      %27 = sbr.rel (0) target = $region13
    $region12: #{fwd.1} parent=1 // pred_region
      _
    $region13: #{fwd.1} parent=1 // pred_fallthru
      _
    // Predicated region
    $region14: #{fwd.1} parent=1 // pred_check
      _
    $region15: #{fwd.1} parent=1 // pred_check_branch
      %29 = sbr.rel (0) target = $region17
    $region16: #{fwd.1} parent=1 // pred_region
      %s31 = ssub.s32 2048, 2048
      %32 = vsyncadd [#allocation5], %s31
      %s33 = sshll.u32 [#allocation4], 4
      %s34 = int_to_ptr.vmem [resolvable:$true] %s33
      %39 = dma.hbm_to_vmem [thread:$0]  %s3, 2048, %s34, [#allocation5], 128, 128, 8
    $region17: #{fwd.1} parent=1 // pred_fallthru
      _
    // Predicated region
    $region18: #{fwd.1} parent=1 // pred_check
      _
    $region19: #{fwd.1} parent=1 // pred_check_branch
      %41 = sbr.rel (0) target = $region21
    $region20: #{fwd.1} parent=1 // pred_region
      _
    $region21: #{fwd.1} parent=1 // pred_fallthru
      _
    // Predicated region
    $region22: #{fwd.1} parent=1 // pred_check
      _
    $region23: #{fwd.1} parent=1 // pred_check_branch
      %43 = sbr.rel (0) target = $region25
    $region24: #{fwd.1} parent=1 // pred_region
      %44 = dma.done [#allocation3], 256
    $region25: #{fwd.1} parent=1 // pred_fallthru
      _
    // Predicated region
    $region26: #{fwd.1} parent=1 // pred_check
      _
    $region27: #{fwd.1} parent=1 // pred_check_branch
      %46 = sbr.rel (0) target = $region29
    $region28: #{fwd.1} parent=1 // pred_region
      %47 = dma.done [#allocation5], 2048
    $region29: #{fwd.1} parent=1 // pred_fallthru
      _
    %v48 = vld [vmem:[%s0] sm:$0xff]
    %v49 = vld [vmem:[#allocation2] sm:$0xff]
    %v50 = vld [vmem:[#allocation2 + $0x8] sm:$0xff]
    %v51 = vld [vmem:[%s2] sm:$0x1]
    %v53 = vlaneseq
    %v54 = vshrl.u32 %v53, 7
    %v55 = vsub.s32 0, %v54
    %v56 = vrot.slane %v51, %v55
    %vm58 = vcmask 130048
    %v60 = vsel %vm58, %v48, 0
    %62 = vmatprep.subr.mxu0 0.0
    %63 = vmatpush1.msra.mxu0 %v49
    %64 = vmatprep.subr.mxu0 0.0
    %65 = vmatpush1.msra.mxu0 %v50
    %66 = vmatprep.subr.mxu0 0.0
    %67 = vmatpush1.msra.mxu0 0.0
    %68 = vmatprep.subr.mxu0 0.0
    %69 = vmatpush1.msra.mxu0 0.0
    %70 = vmatprep.subr.mxu0 0.0
    %71 = vmatpush1.msra.mxu0 0.0
    %72 = vmatprep.subr.mxu0 0.0
    %73 = vmatpush1.msra.mxu0 0.0
    %74 = vmatprep.subr.mxu0 0.0
    %75 = vmatpush1.msra.mxu0 0.0
    %76 = vmatprep.subr.mxu0 0.0
    %77 = vmatpush1.msra.mxu0 0.0
    %78 = vmatprep.subr.mxu0 0.0
    %79 = vmatpush1.msra.mxu0 0.0
    %80 = vmatprep.subr.mxu0 0.0
    %81 = vmatpush1.msra.mxu0 0.0
    %82 = vmatprep.subr.mxu0 0.0
    %83 = vmatpush1.msra.mxu0 0.0
    %84 = vmatprep.subr.mxu0 0.0
    %85 = vmatpush1.msra.mxu0 0.0
    %86 = vmatprep.subr.mxu0 0.0
    %87 = vmatpush1.msra.mxu0 0.0
    %88 = vmatprep.subr.mxu0 0.0
    %89 = vmatpush1.msra.mxu0 0.0
    %90 = vmatprep.subr.mxu0 0.0
    %91 = vmatpush1.msra.mxu0 0.0
    %92 = vmatprep.subr.mxu0 0.0
    %93 = vmatpush1.msra.mxu0 0.0
    %94 = vmatprep.subr.mxu0 0.0
    %95 = vmatpush1.msra.mxu0 0.0
    %96 = vmatprep.subr.mxu0 0.0
    %97 = vmatpush1.msra.mxu0 0.0
    %98 = vmatprep.subr.mxu0 0.0
    %99 = vmatpush1.msra.mxu0 0.0
    %100 = vmatprep.subr.mxu0 0.0
    %101 = vmatpush1.msra.mxu0 0.0
    %102 = vmatprep.subr.mxu0 0.0
    %103 = vmatpush1.msra.mxu0 0.0
    %104 = vmatprep.subr.mxu0 0.0
    %105 = vmatpush1.msra.mxu0 0.0
    %106 = vmatprep.subr.mxu0 0.0
    %107 = vmatpush1.msra.mxu0 0.0
    %108 = vmatprep.subr.mxu0 0.0
    %109 = vmatpush1.msra.mxu0 0.0
    %110 = vmatprep.subr.mxu0 0.0
    %111 = vmatpush1.msra.mxu0 0.0
    %112 = vmatprep.subr.mxu0 0.0
    %113 = vmatpush1.msra.mxu0 0.0
    %114 = vmatprep.subr.mxu0 0.0
    %115 = vmatpush1.msra.mxu0 0.0
    %116 = vmatprep.subr.mxu0 0.0
    %117 = vmatpush1.msra.mxu0 0.0
    %118 = vmatprep.subr.mxu0 0.0
    %119 = vmatpush1.msra.mxu0 0.0
    %120 = vmatprep.subr.mxu0 0.0
    %121 = vmatpush1.msra.mxu0 0.0
    %122 = vmatprep.subr.mxu0 0.0
    %123 = vmatpush1.msra.mxu0 0.0
    %124 = vmatprep.subr.mxu0 0.0
    %125 = vmatpush1.msra.mxu0 0.0
    %126 = vmatprep.mubr.f32.mxu0 0.0
    %127 = vmatmul.mubr.f32.gmra.mrb[0].mxu0 %v60
    %v128 = vpop.f32.mrb[0].mxu0
    %v129 = vadd.f32 %v56, %v128
    %v130 = vpop.f32.mrb[0].mxu0
    %131 = vdwg.mxu0
    %v132 = vmax.f32 %v129, 0.0
    %v133 = vld [vmem:[#allocation4] sm:$0xff]
    %v134 = vld [vmem:[#allocation4 + $0x8] sm:$0xff]
    %v135 = vld [vmem:[#allocation4 + $0x10] sm:$0xff]
    %v136 = vld [vmem:[#allocation4 + $0x18] sm:$0xff]
    %v137 = vld [vmem:[#allocation4 + $0x20] sm:$0xff]
    %v138 = vld [vmem:[#allocation4 + $0x28] sm:$0xff]
    %v139 = vld [vmem:[#allocation4 + $0x30] sm:$0xff]
    %v140 = vld [vmem:[#allocation4 + $0x38] sm:$0xff]
    %v141 = vld [vmem:[#allocation4 + $0x40] sm:$0xff]
    %v142 = vld [vmem:[#allocation4 + $0x48] sm:$0xff]
    %v143 = vld [vmem:[#allocation4 + $0x50] sm:$0xff]
    %v144 = vld [vmem:[#allocation4 + $0x58] sm:$0xff]
    %v145 = vld [vmem:[#allocation4 + $0x60] sm:$0xff]
    %v146 = vld [vmem:[#allocation4 + $0x68] sm:$0xff]
    %v147 = vld [vmem:[#allocation4 + $0x70] sm:$0xff]
    %v148 = vld [vmem:[#allocation4 + $0x78] sm:$0xff]
    %v149 = vld [vmem:[%s4] sm:$0x1]
    %v151 = vlaneseq
    %v152 = vshrl.u32 %v151, 7
    %v153 = vsub.s32 0, %v152
    %v154 = vrot.slane %v149, %v153
    %156 = vmatprep.subr.mxu0 0.0
    %157 = vmatpush1.msra.mxu0 %v133
    %158 = vmatprep.subr.mxu0 0.0
    %159 = vmatpush1.msra.mxu0 %v134
    %160 = vmatprep.subr.mxu0 0.0
    %161 = vmatpush1.msra.mxu0 %v135
    %162 = vmatprep.subr.mxu0 0.0
    %163 = vmatpush1.msra.mxu0 %v136
    %164 = vmatprep.subr.mxu0 0.0
    %165 = vmatpush1.msra.mxu0 %v137
    %166 = vmatprep.subr.mxu0 0.0
    %167 = vmatpush1.msra.mxu0 %v138
    %168 = vmatprep.subr.mxu0 0.0
    %169 = vmatpush1.msra.mxu0 %v139
    %170 = vmatprep.subr.mxu0 0.0
    %171 = vmatpush1.msra.mxu0 %v140
    %172 = vmatprep.subr.mxu0 0.0
    %173 = vmatpush1.msra.mxu0 %v141
    %174 = vmatprep.subr.mxu0 0.0
    %175 = vmatpush1.msra.mxu0 %v142
    %176 = vmatprep.subr.mxu0 0.0
    %177 = vmatpush1.msra.mxu0 %v143
    %178 = vmatprep.subr.mxu0 0.0
    %179 = vmatpush1.msra.mxu0 %v144
    %180 = vmatprep.subr.mxu0 0.0
    %181 = vmatpush1.msra.mxu0 %v145
    %182 = vmatprep.subr.mxu0 0.0
    %183 = vmatpush1.msra.mxu0 %v146
    %184 = vmatprep.subr.mxu0 0.0
    %185 = vmatpush1.msra.mxu0 %v147
    %186 = vmatprep.subr.mxu0 0.0
    %187 = vmatpush1.msra.mxu0 %v148
    %188 = vmatprep.subr.mxu0 0.0
    %189 = vmatpush1.msra.mxu0 0.0
    %190 = vmatprep.subr.mxu0 0.0
    %191 = vmatpush1.msra.mxu0 0.0
    %192 = vmatprep.subr.mxu0 0.0
    %193 = vmatpush1.msra.mxu0 0.0
    %194 = vmatprep.subr.mxu0 0.0
    %195 = vmatpush1.msra.mxu0 0.0
    %196 = vmatprep.subr.mxu0 0.0
    %197 = vmatpush1.msra.mxu0 0.0
    %198 = vmatprep.subr.mxu0 0.0
    %199 = vmatpush1.msra.mxu0 0.0
    %200 = vmatprep.subr.mxu0 0.0
    %201 = vmatpush1.msra.mxu0 0.0
    %202 = vmatprep.subr.mxu0 0.0
    %203 = vmatpush1.msra.mxu0 0.0
    %204 = vmatprep.subr.mxu0 0.0
    %205 = vmatpush1.msra.mxu0 0.0
    %206 = vmatprep.subr.mxu0 0.0
    %207 = vmatpush1.msra.mxu0 0.0
    %208 = vmatprep.subr.mxu0 0.0
    %209 = vmatpush1.msra.mxu0 0.0
    %210 = vmatprep.subr.mxu0 0.0
    %211 = vmatpush1.msra.mxu0 0.0
    %212 = vmatprep.subr.mxu0 0.0
    %213 = vmatpush1.msra.mxu0 0.0
    %214 = vmatprep.subr.mxu0 0.0
    %215 = vmatpush1.msra.mxu0 0.0
    %216 = vmatprep.subr.mxu0 0.0
    %217 = vmatpush1.msra.mxu0 0.0
    %218 = vmatprep.subr.mxu0 0.0
    %219 = vmatpush1.msra.mxu0 0.0
    %220 = vmatprep.mubr.f32.mxu0 0.0
    %221 = vmatmul.mubr.f32.gmra.mrb[0].mxu0 %v132
    %v222 = vpop.f32.mrb[0].mxu0
    %v223 = vadd.f32 %v154, %v222
    %v224 = vpop.f32.mrb[0].mxu0
    %225 = vdwg.mxu0
    %226 = vst [vmem:[%s5] sm:$0xff] %v223
    // Predicated region
    $region30: #{fwd.1} parent=1 // pred_check
      _
    $region31: #{fwd.1} parent=1 // pred_check_branch
      %228 = sbr.rel (0) target = $region33
    $region32: #{fwd.1} parent=1 // pred_region
      _
    $region33: #{fwd.1} parent=1 // pred_fallthru
      _
    // Predicated region
    $region34: #{fwd.1} parent=1 // pred_check
      _
    $region35: #{fwd.1} parent=1 // pred_check_branch
      %230 = sbr.rel (0) target = $region37
    $region36: #{fwd.1} parent=1 // pred_region
      _
    $region37: #{fwd.1} parent=1 // pred_fallthru
      _
    %231 = vsyncpa [#allocation3], 1
    %232 = vsyncpa [#allocation5], 1

</llo_original>
